<compile_context>
chip_gen: v6e
topology: v6e:2x2x1
jax: 0.10.0
libtpu: 0.0.40
codegen_flags: <defaults>
</compile_context>

<pallas_src>
import functools

import jax
import jax.numpy as jnp
from jax.experimental import pallas as pl
from jax.experimental.pallas import tpu as pltpu


def _leaky_relu(x, slope=0.2):
    return jnp.where(x > 0, x, slope * x)


def _disc_kernel(x_ref, w1_ref, w2_ref, w3_ref, w4_ref, w5_ref, o_ref):
    # x_ref: (TB, image_size) f32 — cast to bf16 on the VPU (plenty of slack).
    # w1..w4: (in, out) bf16, VMEM-resident across all grid steps.
    # w5: (1, Hp) f32 (tiny; final layer runs on the VPU/XLU, not the MXU).
    # o_ref: (1, 1, TB) f32 — lane-dense output tile.
    x = x_ref[...].astype(jnp.bfloat16)
    h = jnp.dot(x, w1_ref[...], preferred_element_type=jnp.float32)
    h = _leaky_relu(h).astype(jnp.bfloat16)
    h = jnp.dot(h, w2_ref[...], preferred_element_type=jnp.float32)
    h = _leaky_relu(h).astype(jnp.bfloat16)
    h = jnp.dot(h, w3_ref[...], preferred_element_type=jnp.float32)
    h = _leaky_relu(h).astype(jnp.bfloat16)
    h = jnp.dot(h, w4_ref[...], preferred_element_type=jnp.float32)
    h = _leaky_relu(h)  # (TB, Hp) f32 — keep f32 for the VPU tail
    # Final Hp -> 1 layer: broadcast-row multiply + cross-lane reduce (VPU/XLU).
    o = jnp.sum(h * w5_ref[...], axis=-1)  # (TB,)
    o_ref[...] = o.reshape(o_ref.shape).astype(o_ref.dtype)


def init_discriminator_params(key, image_size, hidden_size):
    """PyTorch-style weights: Linear weight shape is (out_features, in_features),
    init U(-1/sqrt(in), 1/sqrt(in)) like nn.Linear's default."""
    dims = [
        (16 * hidden_size, image_size),
        (4 * hidden_size, 16 * hidden_size),
        (hidden_size, 4 * hidden_size),
        (hidden_size, hidden_size),
        (1, hidden_size),
    ]
    keys = jax.random.split(key, len(dims))
    weights = []
    for k, (out_f, in_f) in zip(keys, dims):
        bound = 1.0 / jnp.sqrt(in_f)
        weights.append(jax.random.uniform(k, (out_f, in_f), jnp.float32, -bound, bound))
    return weights


def _round_up(n, m):
    return ((n + m - 1) // m) * m


def _pad_to(w, rows, cols):
    r, c = w.shape
    return jnp.pad(w, ((0, rows - r), (0, cols - c)))


def prepare_params(pt_weights):
    """One-time conversion of PyTorch (out, in) weights to the kernel layout:
      * first four weights transposed to (in, out) and cast to bf16,
      * hidden dims zero-padded up to multiples of 128 lanes (numerically exact:
        padded columns produce zero activations, LeakyReLU(0)=0, padded rows of
        the next weight are zero),
      * final (1, H) weight kept f32 and lane-padded (consumed as a broadcast
        row on the VPU)."""
    w1, w2, w3, w4, w5 = pt_weights
    d1, d0 = w1.shape          # (16H, image_size)
    d2 = w2.shape[0]           # 4H
    d3 = w3.shape[0]           # H
    p1 = _round_up(d1, 128)
    p2 = _round_up(d2, 128)
    p3 = _round_up(d3, 128)
    return (
        _pad_to(w1.T, d0, p1).astype(jnp.bfloat16),   # (image_size, p1)
        _pad_to(w2.T, p1, p2).astype(jnp.bfloat16),   # (p1, p2)
        _pad_to(w3.T, p2, p3).astype(jnp.bfloat16),   # (p2, p3)
        _pad_to(w4.T, p3, p3).astype(jnp.bfloat16),   # (p3, p3)
        _pad_to(w5, 1, p3).astype(jnp.float32),       # (1, p3)
    )


def _choose_tb(batch):
    """Batch tile: big enough to amortize the ~0.35us per-grid-step overhead,
    but for large B keep >= 2 grid steps so the 'parallel' batch axis spans
    both TensorCores on v7x."""
    b8 = _round_up(max(batch, 1), 8)
    if b8 <= 256:
        return b8                                   # single small tile
    half = _round_up(-(-batch // 2), 128)           # ceil(B/2) rounded to 128
    return min(1024, half)


@functools.partial(jax.jit, static_argnames=("image_size",))
def discriminator_forward(x, params, image_size):
    """x: any shape reshapable to (-1, image_size). params: output of prepare_params."""
    w1, w2, w3, w4, w5 = params
    x2d = x.reshape(-1, image_size).astype(jnp.float32)   # kernel casts to bf16 itself
    B = x2d.shape[0]

    TB = _choose_tb(B)
    B_pad = _round_up(B, TB)
    if B_pad != B:
        # Padded rows carry zeros; rows are independent and discarded below.
        x2d = jnp.pad(x2d, ((0, B_pad - B), (0, 0)))
    nt = B_pad // TB

    def full(shape):
        return pl.BlockSpec(shape, lambda i: (0,) * len(shape))

    out = pl.pallas_call(
        _disc_kernel,
        out_shape=jax.ShapeDtypeStruct((nt, 1, TB), jnp.float32),
        grid=(nt,),
        in_specs=[
            pl.BlockSpec((TB, image_size), lambda i: (i, 0)),  # batch-tiled f32 input
            full(w1.shape),  # weights: same block every step -> VMEM-resident
            full(w2.shape),
            full(w3.shape),
            full(w4.shape),
            full(w5.shape),
        ],
        out_specs=pl.BlockSpec((1, 1, TB), lambda i: (i, 0, 0)),  # lane-dense output
        compiler_params=pltpu.CompilerParams(
            dimension_semantics=("parallel",),   # megacore batch sharding on v7x
            vmem_limit_bytes=32 << 20,           # headroom on v7x's 64 MiB physical VMEM
        ),
    )(x2d, w1, w2, w3, w4, w5)

    return out.reshape(-1)[:B].reshape(B, 1)


def _reference_forward(x, params, image_size):
    """Pure-JAX reference following the same dtype path as the kernel."""
    w1, w2, w3, w4, w5 = params
    h = x.reshape(-1, image_size).astype(jnp.bfloat16)
    h = jnp.dot(h, w1, preferred_element_type=jnp.float32)
    h = _leaky_relu(h).astype(jnp.bfloat16)
    h = jnp.dot(h, w2, preferred_element_type=jnp.float32)
    h = _leaky_relu(h).astype(jnp.bfloat16)
    h = jnp.dot(h, w3, preferred_element_type=jnp.float32)
    h = _leaky_relu(h).astype(jnp.bfloat16)
    h = jnp.dot(h, w4, preferred_element_type=jnp.float32)
    h = _leaky_relu(h)
    return jnp.sum(h * w5, axis=-1, keepdims=True)


if __name__ == "__main__":
    image_size = 256   # 1x16x16 single-channel images, flattened
    hidden_size = 32
    latent_size = 16   # unused by forward (kept for module-signature parity)
    num_chanel = 1     # unused by forward
    batch = 8

    key = jax.random.PRNGKey(0)
    k_x, k_w, k_x2 = jax.random.split(key, 3)

    pt_weights = init_discriminator_params(k_w, image_size, hidden_size)
    params = prepare_params(pt_weights)  # transpose + pad + cast ONCE, not per call

    # Small batch: single grid step.
    x = jax.random.normal(k_x, (batch, num_chanel, 16, 16), jnp.float32)
    out = discriminator_forward(x, params, image_size)
    out = jax.block_until_ready(out)
    ref = _reference_forward(x, params, image_size)
    assert out.shape == (batch, 1), out.shape
    assert jnp.allclose(out, ref, atol=5e-3, rtol=5e-3), (
        "small-batch mismatch vs reference: max abs diff = "
        f"{float(jnp.max(jnp.abs(out - ref)))}"
    )

    # Moderate batch: exercises multi-step grid + batch padding + lane-dense stores.
    batch2 = 320
    x2 = jax.random.normal(k_x2, (batch2, num_chanel, 16, 16), jnp.float32)
    out2 = jax.block_until_ready(discriminator_forward(x2, params, image_size))
    ref2 = _reference_forward(x2, params, image_size)
    assert out2.shape == (batch2, 1), out2.shape
    assert jnp.allclose(out2, ref2, atol=5e-3, rtol=5e-3), (
        "multi-tile mismatch vs reference: max abs diff = "
        f"{float(jnp.max(jnp.abs(out2 - ref2)))}"
    )

    print("KERNEL_OK")
</pallas_src>

<mosaic_0001>
module attributes {stable_mosaic.version = 11 : i64} {
  func.func @_disc_kernel(%arg0: i32, %arg1: memref<8x256xf32, #tpu.memory_space<vmem>>, %arg2: memref<256x512xbf16, #tpu.memory_space<vmem>>, %arg3: memref<512x128xbf16, #tpu.memory_space<vmem>>, %arg4: memref<128x128xbf16, #tpu.memory_space<vmem>>, %arg5: memref<128x128xbf16, #tpu.memory_space<vmem>>, %arg6: memref<1x128xf32, #tpu.memory_space<vmem>>, %arg7: memref<1x1x8xf32, #tpu.memory_space<vmem>>) attributes {dimension_semantics = [#tpu.dimension_semantics<parallel>], iteration_bounds = array<i64: 1>, scalar_prefetch = 0 : i64, scratch_operands = 0 : i64, tpu.core_type = #tpu.core_type<tc>, window_params = [{transform_indices = @transform_0, window_bounds = array<i64: 8, 256>}, {pipeline_mode = #tpu.pipeline_mode<synchronous>, transform_indices = @transform_1, window_bounds = array<i64: 256, 512>}, {pipeline_mode = #tpu.pipeline_mode<synchronous>, transform_indices = @transform_2, window_bounds = array<i64: 512, 128>}, {pipeline_mode = #tpu.pipeline_mode<synchronous>, transform_indices = @transform_3, window_bounds = array<i64: 128, 128>}, {pipeline_mode = #tpu.pipeline_mode<synchronous>, transform_indices = @transform_4, window_bounds = array<i64: 128, 128>}, {pipeline_mode = #tpu.pipeline_mode<synchronous>, transform_indices = @transform_5, window_bounds = array<i64: 1, 128>}, {transform_indices = @transform_6, window_bounds = array<i64: 1, 1, 8>}]} {
    %c0 = arith.constant 0 : index
    %c0_0 = arith.constant 0 : index
    %0 = vector.load %arg1[%c0, %c0_0] : memref<8x256xf32, #tpu.memory_space<vmem>>, vector<8x256xf32>
    %1 = arith.truncf %0 : vector<8x256xf32> to vector<8x256xbf16>
    %c0_1 = arith.constant 0 : index
    %c0_2 = arith.constant 0 : index
    %2 = vector.load %arg2[%c0_1, %c0_2] : memref<256x512xbf16, #tpu.memory_space<vmem>>, vector<256x512xbf16>
    %cst = arith.constant dense<0.000000e+00> : vector<8x512xf32>
    %3 = tpu.matmul %1, %2, %cst {dimension_numbers = #tpu.dot_dimension_numbers<[1], [0], [0], [1], [0, 0, 1, 1], [], []>} : vector<8x256xbf16>, vector<256x512xbf16>, vector<8x512xf32> -> vector<8x512xf32>
    %cst_3 = arith.constant 0.000000e+00 : f32
    %4 = vector.broadcast %cst_3 : f32 to vector<8x512xf32>
    %5 = arith.cmpf ogt, %3, %4 : vector<8x512xf32>
    %cst_4 = arith.constant 2.000000e-01 : f32
    %6 = vector.broadcast %cst_4 : f32 to vector<8x512xf32>
    %7 = arith.mulf %6, %3 : vector<8x512xf32>
    %8 = arith.select %5, %3, %7 : vector<8x512xi1>, vector<8x512xf32>
    %9 = arith.truncf %8 : vector<8x512xf32> to vector<8x512xbf16>
    %c0_5 = arith.constant 0 : index
    %c0_6 = arith.constant 0 : index
    %10 = vector.load %arg3[%c0_5, %c0_6] : memref<512x128xbf16, #tpu.memory_space<vmem>>, vector<512x128xbf16>
    %cst_7 = arith.constant dense<0.000000e+00> : vector<8x128xf32>
    %11 = tpu.matmul %9, %10, %cst_7 {dimension_numbers = #tpu.dot_dimension_numbers<[1], [0], [0], [1], [0, 0, 1, 1], [], []>} : vector<8x512xbf16>, vector<512x128xbf16>, vector<8x128xf32> -> vector<8x128xf32>
    %cst_8 = arith.constant 0.000000e+00 : f32
    %12 = vector.broadcast %cst_8 : f32 to vector<8x128xf32>
    %13 = arith.cmpf ogt, %11, %12 : vector<8x128xf32>
    %cst_9 = arith.constant 2.000000e-01 : f32
    %14 = vector.broadcast %cst_9 : f32 to vector<8x128xf32>
    %15 = arith.mulf %14, %11 : vector<8x128xf32>
    %16 = arith.select %13, %11, %15 : vector<8x128xi1>, vector<8x128xf32>
    %17 = arith.truncf %16 : vector<8x128xf32> to vector<8x128xbf16>
    %c0_10 = arith.constant 0 : index
    %c0_11 = arith.constant 0 : index
    %18 = vector.load %arg4[%c0_10, %c0_11] : memref<128x128xbf16, #tpu.memory_space<vmem>>, vector<128x128xbf16>
    %cst_12 = arith.constant dense<0.000000e+00> : vector<8x128xf32>
    %19 = tpu.matmul %17, %18, %cst_12 {dimension_numbers = #tpu.dot_dimension_numbers<[1], [0], [0], [1], [0, 0, 1, 1], [], []>} : vector<8x128xbf16>, vector<128x128xbf16>, vector<8x128xf32> -> vector<8x128xf32>
    %cst_13 = arith.constant 0.000000e+00 : f32
    %20 = vector.broadcast %cst_13 : f32 to vector<8x128xf32>
    %21 = arith.cmpf ogt, %19, %20 : vector<8x128xf32>
    %cst_14 = arith.constant 2.000000e-01 : f32
    %22 = vector.broadcast %cst_14 : f32 to vector<8x128xf32>
    %23 = arith.mulf %22, %19 : vector<8x128xf32>
    %24 = arith.select %21, %19, %23 : vector<8x128xi1>, vector<8x128xf32>
    %25 = arith.truncf %24 : vector<8x128xf32> to vector<8x128xbf16>
    %c0_15 = arith.constant 0 : index
    %c0_16 = arith.constant 0 : index
    %26 = vector.load %arg5[%c0_15, %c0_16] : memref<128x128xbf16, #tpu.memory_space<vmem>>, vector<128x128xbf16>
    %cst_17 = arith.constant dense<0.000000e+00> : vector<8x128xf32>
    %27 = tpu.matmul %25, %26, %cst_17 {dimension_numbers = #tpu.dot_dimension_numbers<[1], [0], [0], [1], [0, 0, 1, 1], [], []>} : vector<8x128xbf16>, vector<128x128xbf16>, vector<8x128xf32> -> vector<8x128xf32>
    %cst_18 = arith.constant 0.000000e+00 : f32
    %28 = vector.broadcast %cst_18 : f32 to vector<8x128xf32>
    %29 = arith.cmpf ogt, %27, %28 : vector<8x128xf32>
    %cst_19 = arith.constant 2.000000e-01 : f32
    %30 = vector.broadcast %cst_19 : f32 to vector<8x128xf32>
    %31 = arith.mulf %30, %27 : vector<8x128xf32>
    %32 = arith.select %29, %27, %31 : vector<8x128xi1>, vector<8x128xf32>
    %c0_20 = arith.constant 0 : index
    %c0_21 = arith.constant 0 : index
    %33 = vector.load %arg6[%c0_20, %c0_21] : memref<1x128xf32, #tpu.memory_space<vmem>>, vector<1x128xf32>
    %34 = vector.broadcast %33 : vector<1x128xf32> to vector<8x128xf32>
    %35 = arith.mulf %32, %34 : vector<8x128xf32>
    %cst_22 = arith.constant dense<0.000000e+00> : vector<8xf32>
    %36 = vector.multi_reduction <add>, %35, %cst_22 [1] : vector<8x128xf32> to vector<8xf32>
    %37 = vector.shape_cast %36 : vector<8xf32> to vector<1x1x8xf32>
    %c0_23 = arith.constant 0 : index
    %c0_24 = arith.constant 0 : index
    %c0_25 = arith.constant 0 : index
    %38 = vector.load %arg7[%c0_23, %c0_24, %c0_25] : memref<1x1x8xf32, #tpu.memory_space<vmem>>, vector<1x1x8xf32>
    tpu.vector_store %arg7[%c0_23, %c0_24, %c0_25], %37 {strides = array<i32>} : memref<1x1x8xf32, #tpu.memory_space<vmem>>, vector<1x1x8xf32>,
    return
  }
  func.func @transform_0(%arg0: i32) -> (i32, i32) {
    %c0_i32 = arith.constant 0 : i32
    %c0_i32_0 = arith.constant 0 : i32
    return %arg0, %c0_i32 : i32, i32
  }
  func.func @transform_1(%arg0: i32) -> (i32, i32) {
    %c0_i32 = arith.constant 0 : i32
    %c0_i32_0 = arith.constant 0 : i32
    %c0_i32_1 = arith.constant 0 : i32
    return %c0_i32, %c0_i32_0 : i32, i32
  }
  func.func @transform_2(%arg0: i32) -> (i32, i32) {
    %c0_i32 = arith.constant 0 : i32
    %c0_i32_0 = arith.constant 0 : i32
    %c0_i32_1 = arith.constant 0 : i32
    return %c0_i32, %c0_i32_0 : i32, i32
  }
  func.func @transform_3(%arg0: i32) -> (i32, i32) {
    %c0_i32 = arith.constant 0 : i32
    %c0_i32_0 = arith.constant 0 : i32
    %c0_i32_1 = arith.constant 0 : i32
    return %c0_i32, %c0_i32_0 : i32, i32
  }
  func.func @transform_4(%arg0: i32) -> (i32, i32) {
    %c0_i32 = arith.constant 0 : i32
    %c0_i32_0 = arith.constant 0 : i32
    %c0_i32_1 = arith.constant 0 : i32
    return %c0_i32, %c0_i32_0 : i32, i32
  }
  func.func @transform_5(%arg0: i32) -> (i32, i32) {
    %c0_i32 = arith.constant 0 : i32
    %c0_i32_0 = arith.constant 0 : i32
    %c0_i32_1 = arith.constant 0 : i32
    return %c0_i32, %c0_i32_0 : i32, i32
  }
  func.func @transform_6(%arg0: i32) -> (i32, i32, i32) {
    %c0_i32 = arith.constant 0 : i32
    %c0_i32_0 = arith.constant 0 : i32
    %c0_i32_1 = arith.constant 0 : i32
    return %arg0, %c0_i32, %c0_i32_0 : i32, i32, i32
  }
}

</mosaic_0001>

<llo_original>
// kernel: discriminator_forward.1
$region0: #{discriminator_forward.1}
  #allocation0 [shape = 'u32[]', space=smem, size = 0x4, offset = 0x4, fixed_abs, tag = 'smem constant byte address 0x4 - core index']
  #allocation1 [shape = 'u32[144,128]{1,0:T(1,128)}', space=vmem, size = 0x12000, scoped, tag = 'internal scratch']
  %s0 = inlined_call_operand.vmem [shape: f32[8,256], index: 0, kind: input, shape index: {}]
  %s1 = inlined_call_operand.hbm [shape: bf16[256,512], index: 1, kind: input, shape index: {}]
  %s2 = inlined_call_operand.hbm [shape: bf16[512,128], index: 2, kind: input, shape index: {}]
  %s3 = inlined_call_operand.vmem [shape: bf16[128,128], index: 3, kind: input, shape index: {}]
  %s4 = inlined_call_operand.vmem [shape: bf16[128,128], index: 4, kind: input, shape index: {}]
  %s5 = inlined_call_operand.vmem [shape: f32[1,128], index: 5, kind: input, shape index: {}]
  %s6 = inlined_call_operand.hbm [shape: f32[1,1,8], index: 6, kind: output, shape index: {}]
  %s7 = sld [smem:[#allocation0]]
  $region42: #{discriminator_forward.1} parent=0
    _
  %s9 = ssub.s32 1, %s7
  %s10 = scalar_select 0, %s9, %s7
  $region1: #{discriminator_forward.1} parent=0
    #allocation2 [shape = 'u8[262144]{0}', space=vmem, size = 0x40000, scoped, tag = 'input window, operand 1, single buffered']
    #allocation3 [shape = 's32[1]{0}', space=sflag, size = 0x4, scoped, tag = 'scoped memory for discriminator_forward.1']
    #allocation4 [shape = 's32[1]{0}', space=sflag, size = 0x4, scoped, tag = 'scoped memory for discriminator_forward.1']
    #allocation5 [shape = 'u8[131072]{0}', space=vmem, size = 0x20000, scoped, tag = 'input window, operand 2, single buffered']
    #allocation6 [shape = 's32[1]{0}', space=sflag, size = 0x4, scoped, tag = 'scoped memory for discriminator_forward.1']
    #allocation7 [shape = 'u8[512]{0}', space=vmem, size = 0x400, scoped, tag = 'output window, operand 0, single buffered']
    %11 = vsyncpa [#allocation3], 0
    %12 = vsyncpa [#allocation6], 0
    %13 = vsyncpa [#allocation4], 0
    // Predicated region
    $region2: #{discriminator_forward.1} parent=1 // pred_check
      _
    $region3: #{discriminator_forward.1} parent=1 // pred_check_branch
      %15 = sbr.rel (0) target = $region5
    $region4: #{discriminator_forward.1} parent=1 // pred_region
      _
    $region5: #{discriminator_forward.1} parent=1 // pred_fallthru
      _
    // Predicated region
    $region6: #{discriminator_forward.1} parent=1 // pred_check
      _
    $region7: #{discriminator_forward.1} parent=1 // pred_check_branch
      %17 = sbr.rel (0) target = $region9
    $region8: #{discriminator_forward.1} parent=1 // pred_region
      %s19 = ssub.s32 8192, 8192
      %20 = vsyncadd [#allocation3], %s19
      %s21 = sshll.u32 [#allocation2], 4
      %s22 = int_to_ptr.vmem [resolvable:$true] %s21
      %27 = dma.hbm_to_vmem [thread:$0]  %s1, 8192, %s22, [#allocation3], 256, 256, 16
    $region9: #{discriminator_forward.1} parent=1 // pred_fallthru
      _
    // Predicated region
    $region10: #{discriminator_forward.1} parent=1 // pred_check
      _
    $region11: #{discriminator_forward.1} parent=1 // pred_check_branch
      %29 = sbr.rel (0) target = $region13
    $region12: #{discriminator_forward.1} parent=1 // pred_region
      %s31 = ssub.s32 4096, 4096
      %32 = vsyncadd [#allocation6], %s31
      %s33 = sshll.u32 [#allocation5], 4
      %s34 = int_to_ptr.vmem [resolvable:$true] %s33
      %39 = dma.hbm_to_vmem [thread:$0]  %s2, 4096, %s34, [#allocation6], 64, 64, 4
    $region13: #{discriminator_forward.1} parent=1 // pred_fallthru
      _
    // Predicated region
    $region14: #{discriminator_forward.1} parent=1 // pred_check
      _
    $region15: #{discriminator_forward.1} parent=1 // pred_check_branch
      %41 = sbr.rel (0) target = $region17
    $region16: #{discriminator_forward.1} parent=1 // pred_region
      _
    $region17: #{discriminator_forward.1} parent=1 // pred_fallthru
      _
    // Predicated region
    $region18: #{discriminator_forward.1} parent=1 // pred_check
      _
    $region19: #{discriminator_forward.1} parent=1 // pred_check_branch
      %43 = sbr.rel (0) target = $region21
    $region20: #{discriminator_forward.1} parent=1 // pred_region
      _
    $region21: #{discriminator_forward.1} parent=1 // pred_fallthru
      _
    // Predicated region
    $region22: #{discriminator_forward.1} parent=1 // pred_check
      _
    $region23: #{discriminator_forward.1} parent=1 // pred_check_branch
      %45 = sbr.rel (0) target = $region25
    $region24: #{discriminator_forward.1} parent=1 // pred_region
      _
    $region25: #{discriminator_forward.1} parent=1 // pred_fallthru
      _
    // Predicated region
    $region26: #{discriminator_forward.1} parent=1 // pred_check
      _
    $region27: #{discriminator_forward.1} parent=1 // pred_check_branch
      %47 = sbr.rel (0) target = $region29
    $region28: #{discriminator_forward.1} parent=1 // pred_region
      %48 = dma.done [#allocation3], 8192
    $region29: #{discriminator_forward.1} parent=1 // pred_fallthru
      _
    // Predicated region
    $region30: #{discriminator_forward.1} parent=1 // pred_check
      _
    $region31: #{discriminator_forward.1} parent=1 // pred_check_branch
      %50 = sbr.rel (0) target = $region33
    $region32: #{discriminator_forward.1} parent=1 // pred_region
      %51 = dma.done [#allocation6], 4096
    $region33: #{discriminator_forward.1} parent=1 // pred_fallthru
      _
    %v53 = vld [vmem:[%s0] sm:$0xff]
    %v54 = vld [vmem:[%s0 + $0x8] sm:$0xff]
    %v55 = vpack.c.bf16 %v53, %v53
    %v56 = vpack.c.bf16 %v54, %v54
    %v57 = vld [vmem:[#allocation2] sm:$0xff]
    %v58 = vld [vmem:[#allocation2 + $0x8] sm:$0xff]
    %v59 = vld [vmem:[#allocation2 + $0x10] sm:$0xff]
    %v60 = vld [vmem:[#allocation2 + $0x18] sm:$0xff]
    %v61 = vld [vmem:[#allocation2 + $0x20] sm:$0xff]
    %v62 = vld [vmem:[#allocation2 + $0x28] sm:$0xff]
    %v63 = vld [vmem:[#allocation2 + $0x30] sm:$0xff]
    %v64 = vld [vmem:[#allocation2 + $0x38] sm:$0xff]
    %v65 = vld [vmem:[#allocation2 + $0x40] sm:$0xff]
    %v66 = vld [vmem:[#allocation2 + $0x48] sm:$0xff]
    %v67 = vld [vmem:[#allocation2 + $0x50] sm:$0xff]
    %v68 = vld [vmem:[#allocation2 + $0x58] sm:$0xff]
    %v69 = vld [vmem:[#allocation2 + $0x60] sm:$0xff]
    %v70 = vld [vmem:[#allocation2 + $0x68] sm:$0xff]
    %v71 = vld [vmem:[#allocation2 + $0x70] sm:$0xff]
    %v72 = vld [vmem:[#allocation2 + $0x78] sm:$0xff]
    %v73 = vld [vmem:[#allocation2 + $0x80] sm:$0xff]
    %v74 = vld [vmem:[#allocation2 + $0x88] sm:$0xff]
    %v75 = vld [vmem:[#allocation2 + $0x90] sm:$0xff]
    %v76 = vld [vmem:[#allocation2 + $0x98] sm:$0xff]
    %v77 = vld [vmem:[#allocation2 + $0xa0] sm:$0xff]
    %v78 = vld [vmem:[#allocation2 + $0xa8] sm:$0xff]
    %v79 = vld [vmem:[#allocation2 + $0xb0] sm:$0xff]
    %v80 = vld [vmem:[#allocation2 + $0xb8] sm:$0xff]
    %v81 = vld [vmem:[#allocation2 + $0xc0] sm:$0xff]
    %v82 = vld [vmem:[#allocation2 + $0xc8] sm:$0xff]
    %v83 = vld [vmem:[#allocation2 + $0xd0] sm:$0xff]
    %v84 = vld [vmem:[#allocation2 + $0xd8] sm:$0xff]
    %v85 = vld [vmem:[#allocation2 + $0xe0] sm:$0xff]
    %v86 = vld [vmem:[#allocation2 + $0xe8] sm:$0xff]
    %v87 = vld [vmem:[#allocation2 + $0xf0] sm:$0xff]
    %v88 = vld [vmem:[#allocation2 + $0xf8] sm:$0xff]
    %v89 = vld [vmem:[#allocation2 + $0x100] sm:$0xff]
    %v90 = vld [vmem:[#allocation2 + $0x108] sm:$0xff]
    %v91 = vld [vmem:[#allocation2 + $0x110] sm:$0xff]
    %v92 = vld [vmem:[#allocation2 + $0x118] sm:$0xff]
    %v93 = vld [vmem:[#allocation2 + $0x120] sm:$0xff]
    %v94 = vld [vmem:[#allocation2 + $0x128] sm:$0xff]
    %v95 = vld [vmem:[#allocation2 + $0x130] sm:$0xff]
    %v96 = vld [vmem:[#allocation2 + $0x138] sm:$0xff]
    %v97 = vld [vmem:[#allocation2 + $0x140] sm:$0xff]
    %v98 = vld [vmem:[#allocation2 + $0x148] sm:$0xff]
    %v99 = vld [vmem:[#allocation2 + $0x150] sm:$0xff]
    %v100 = vld [vmem:[#allocation2 + $0x158] sm:$0xff]
    %v101 = vld [vmem:[#allocation2 + $0x160] sm:$0xff]
    %v102 = vld [vmem:[#allocation2 + $0x168] sm:$0xff]
    %v103 = vld [vmem:[#allocation2 + $0x170] sm:$0xff]
    %v104 = vld [vmem:[#allocation2 + $0x178] sm:$0xff]
    %v105 = vld [vmem:[#allocation2 + $0x180] sm:$0xff]
    %v106 = vld [vmem:[#allocation2 + $0x188] sm:$0xff]
    %v107 = vld [vmem:[#allocation2 + $0x190] sm:$0xff]
    %v108 = vld [vmem:[#allocation2 + $0x198] sm:$0xff]
    %v109 = vld [vmem:[#allocation2 + $0x1a0] sm:$0xff]
    %v110 = vld [vmem:[#allocation2 + $0x1a8] sm:$0xff]
    %v111 = vld [vmem:[#allocation2 + $0x1b0] sm:$0xff]
    %v112 = vld [vmem:[#allocation2 + $0x1b8] sm:$0xff]
    %v113 = vld [vmem:[#allocation2 + $0x1c0] sm:$0xff]
    %v114 = vld [vmem:[#allocation2 + $0x1c8] sm:$0xff]
    %v115 = vld [vmem:[#allocation2 + $0x1d0] sm:$0xff]
    %v116 = vld [vmem:[#allocation2 + $0x1d8] sm:$0xff]
    %v117 = vld [vmem:[#allocation2 + $0x1e0] sm:$0xff]
    %v118 = vld [vmem:[#allocation2 + $0x1e8] sm:$0xff]
    %v119 = vld [vmem:[#allocation2 + $0x1f0] sm:$0xff]
    %v120 = vld [vmem:[#allocation2 + $0x1f8] sm:$0xff]
    %v185 = vunpack.c.l.b16 %v57
    %v186 = vunpack.c.h.b16 %v57
    %v187 = vunpack.c.l.b16 %v58
    %v188 = vunpack.c.h.b16 %v58
    %v189 = vunpack.c.l.b16 %v59
    %v190 = vunpack.c.h.b16 %v59
    %v191 = vunpack.c.l.b16 %v60
    %v192 = vunpack.c.h.b16 %v60
    %v193 = vunpack.c.l.b16 %v61
    %v194 = vunpack.c.h.b16 %v61
    %v195 = vunpack.c.l.b16 %v62
    %v196 = vunpack.c.h.b16 %v62
    %v197 = vunpack.c.l.b16 %v63
    %v198 = vunpack.c.h.b16 %v63
    %v199 = vunpack.c.l.b16 %v64
    %v200 = vunpack.c.h.b16 %v64
    %v201 = vunpack.c.l.b16 %v65
    %v202 = vunpack.c.h.b16 %v65
    %v203 = vunpack.c.l.b16 %v66
    %v204 = vunpack.c.h.b16 %v66
    %v205 = vunpack.c.l.b16 %v67
    %v206 = vunpack.c.h.b16 %v67
    %v207 = vunpack.c.l.b16 %v68
    %v208 = vunpack.c.h.b16 %v68
    %v209 = vunpack.c.l.b16 %v69
    %v210 = vunpack.c.h.b16 %v69
    %v211 = vunpack.c.l.b16 %v70
    %v212 = vunpack.c.h.b16 %v70
    %v213 = vunpack.c.l.b16 %v71
    %v214 = vunpack.c.h.b16 %v71
    %v215 = vunpack.c.l.b16 %v72
    %v216 = vunpack.c.h.b16 %v72
    %v217 = vunpack.c.l.b16 %v73
    %v218 = vunpack.c.h.b16 %v73
    %v219 = vunpack.c.l.b16 %v74
    %v220 = vunpack.c.h.b16 %v74
    %v221 = vunpack.c.l.b16 %v75
    %v222 = vunpack.c.h.b16 %v75
    %v223 = vunpack.c.l.b16 %v76
    %v224 = vunpack.c.h.b16 %v76
    %v225 = vunpack.c.l.b16 %v77
    %v226 = vunpack.c.h.b16 %v77
    %v227 = vunpack.c.l.b16 %v78
    %v228 = vunpack.c.h.b16 %v78
    %v229 = vunpack.c.l.b16 %v79
    %v230 = vunpack.c.h.b16 %v79
    %v231 = vunpack.c.l.b16 %v80
    %v232 = vunpack.c.h.b16 %v80
    %v233 = vunpack.c.l.b16 %v81
    %v234 = vunpack.c.h.b16 %v81
    %v235 = vunpack.c.l.b16 %v82
    %v236 = vunpack.c.h.b16 %v82
    %v237 = vunpack.c.l.b16 %v83
    %v238 = vunpack.c.h.b16 %v83
    %v239 = vunpack.c.l.b16 %v84
    %v240 = vunpack.c.h.b16 %v84
    %v241 = vunpack.c.l.b16 %v85
    %v242 = vunpack.c.h.b16 %v85
    %v243 = vunpack.c.l.b16 %v86
    %v244 = vunpack.c.h.b16 %v86
    %v245 = vunpack.c.l.b16 %v87
    %v246 = vunpack.c.h.b16 %v87
    %v247 = vunpack.c.l.b16 %v88
    %v248 = vunpack.c.h.b16 %v88
    %v249 = vunpack.c.l.b16 %v89
    %v250 = vunpack.c.h.b16 %v89
    %v251 = vunpack.c.l.b16 %v90
    %v252 = vunpack.c.h.b16 %v90
    %v253 = vunpack.c.l.b16 %v91
    %v254 = vunpack.c.h.b16 %v91
    %v255 = vunpack.c.l.b16 %v92
    %v256 = vunpack.c.h.b16 %v92
    %v257 = vunpack.c.l.b16 %v93
    %v258 = vunpack.c.h.b16 %v93
    %v259 = vunpack.c.l.b16 %v94
    %v260 = vunpack.c.h.b16 %v94
    %v261 = vunpack.c.l.b16 %v95
    %v262 = vunpack.c.h.b16 %v95
    %v263 = vunpack.c.l.b16 %v96
    %v264 = vunpack.c.h.b16 %v96
    %v265 = vunpack.c.l.b16 %v97
    %v266 = vunpack.c.h.b16 %v97
    %v267 = vunpack.c.l.b16 %v98
    %v268 = vunpack.c.h.b16 %v98
    %v269 = vunpack.c.l.b16 %v99
    %v270 = vunpack.c.h.b16 %v99
    %v271 = vunpack.c.l.b16 %v100
    %v272 = vunpack.c.h.b16 %v100
    %v273 = vunpack.c.l.b16 %v101
    %v274 = vunpack.c.h.b16 %v101
    %v275 = vunpack.c.l.b16 %v102
    %v276 = vunpack.c.h.b16 %v102
    %v277 = vunpack.c.l.b16 %v103
    %v278 = vunpack.c.h.b16 %v103
    %v279 = vunpack.c.l.b16 %v104
    %v280 = vunpack.c.h.b16 %v104
    %v281 = vunpack.c.l.b16 %v105
    %v282 = vunpack.c.h.b16 %v105
    %v283 = vunpack.c.l.b16 %v106
    %v284 = vunpack.c.h.b16 %v106
    %v285 = vunpack.c.l.b16 %v107
    %v286 = vunpack.c.h.b16 %v107
    %v287 = vunpack.c.l.b16 %v108
    %v288 = vunpack.c.h.b16 %v108
    %v289 = vunpack.c.l.b16 %v109
    %v290 = vunpack.c.h.b16 %v109
    %v291 = vunpack.c.l.b16 %v110
    %v292 = vunpack.c.h.b16 %v110
    %v293 = vunpack.c.l.b16 %v111
    %v294 = vunpack.c.h.b16 %v111
    %v295 = vunpack.c.l.b16 %v112
    %v296 = vunpack.c.h.b16 %v112
    %v297 = vunpack.c.l.b16 %v113
    %v298 = vunpack.c.h.b16 %v113
    %v299 = vunpack.c.l.b16 %v114
    %v300 = vunpack.c.h.b16 %v114
    %v301 = vunpack.c.l.b16 %v115
    %v302 = vunpack.c.h.b16 %v115
    %v303 = vunpack.c.l.b16 %v116
    %v304 = vunpack.c.h.b16 %v116
    %v305 = vunpack.c.l.b16 %v117
    %v306 = vunpack.c.h.b16 %v117
    %v307 = vunpack.c.l.b16 %v118
    %v308 = vunpack.c.h.b16 %v118
    %v309 = vunpack.c.l.b16 %v119
    %v310 = vunpack.c.h.b16 %v119
    %v311 = vunpack.c.l.b16 %v120
    %v312 = vunpack.c.h.b16 %v120
    %v313 = vpack.c.b16 %v189, %v185
    %v314 = vpack.c.b16 %v190, %v186
    %v315 = vpack.c.b16 %v191, %v187
    %v316 = vpack.c.b16 %v192, %v188
    %v317 = vpack.c.b16 %v197, %v193
    %v318 = vpack.c.b16 %v198, %v194
    %v319 = vpack.c.b16 %v199, %v195
    %v320 = vpack.c.b16 %v200, %v196
    %v321 = vpack.c.b16 %v205, %v201
    %v322 = vpack.c.b16 %v206, %v202
    %v323 = vpack.c.b16 %v207, %v203
    %v324 = vpack.c.b16 %v208, %v204
    %v325 = vpack.c.b16 %v213, %v209
    %v326 = vpack.c.b16 %v214, %v210
    %v327 = vpack.c.b16 %v215, %v211
    %v328 = vpack.c.b16 %v216, %v212
    %v329 = vpack.c.b16 %v221, %v217
    %v330 = vpack.c.b16 %v222, %v218
    %v331 = vpack.c.b16 %v223, %v219
    %v332 = vpack.c.b16 %v224, %v220
    %v333 = vpack.c.b16 %v229, %v225
    %v334 = vpack.c.b16 %v230, %v226
    %v335 = vpack.c.b16 %v231, %v227
    %v336 = vpack.c.b16 %v232, %v228
    %v337 = vpack.c.b16 %v237, %v233
    %v338 = vpack.c.b16 %v238, %v234
    %v339 = vpack.c.b16 %v239, %v235
    %v340 = vpack.c.b16 %v240, %v236
    %v341 = vpack.c.b16 %v245, %v241
    %v342 = vpack.c.b16 %v246, %v242
    %v343 = vpack.c.b16 %v247, %v243
    %v344 = vpack.c.b16 %v248, %v244
    %v345 = vpack.c.b16 %v253, %v249
    %v346 = vpack.c.b16 %v254, %v250
    %v347 = vpack.c.b16 %v255, %v251
    %v348 = vpack.c.b16 %v256, %v252
    %v349 = vpack.c.b16 %v261, %v257
    %v350 = vpack.c.b16 %v262, %v258
    %v351 = vpack.c.b16 %v263, %v259
    %v352 = vpack.c.b16 %v264, %v260
    %v353 = vpack.c.b16 %v269, %v265
    %v354 = vpack.c.b16 %v270, %v266
    %v355 = vpack.c.b16 %v271, %v267
    %v356 = vpack.c.b16 %v272, %v268
    %v357 = vpack.c.b16 %v277, %v273
    %v358 = vpack.c.b16 %v278, %v274
    %v359 = vpack.c.b16 %v279, %v275
    %v360 = vpack.c.b16 %v280, %v276
    %v361 = vpack.c.b16 %v285, %v281
    %v362 = vpack.c.b16 %v286, %v282
    %v363 = vpack.c.b16 %v287, %v283
    %v364 = vpack.c.b16 %v288, %v284
    %v365 = vpack.c.b16 %v293, %v289
    %v366 = vpack.c.b16 %v294, %v290
    %v367 = vpack.c.b16 %v295, %v291
    %v368 = vpack.c.b16 %v296, %v292
    %v369 = vpack.c.b16 %v301, %v297
    %v370 = vpack.c.b16 %v302, %v298
    %v371 = vpack.c.b16 %v303, %v299
    %v372 = vpack.c.b16 %v304, %v300
    %v373 = vpack.c.b16 %v309, %v305
    %v374 = vpack.c.b16 %v310, %v306
    %v375 = vpack.c.b16 %v311, %v307
    %v376 = vpack.c.b16 %v312, %v308
    %441 = vmatprep.subr.bf16.mxu0 %v342
    %442 = vmatpush1.bf16.msra.mxu0 %v341
    %443 = vmatprep.subr.bf16.mxu0 %v338
    %444 = vmatpush1.bf16.msra.mxu0 %v337
    %445 = vmatprep.subr.bf16.mxu0 %v334
    %446 = vmatpush1.bf16.msra.mxu0 %v333
    %447 = vmatprep.subr.bf16.mxu0 %v330
    %448 = vmatpush1.bf16.msra.mxu0 %v329
    %449 = vmatprep.subr.bf16.mxu0 %v326
    %450 = vmatpush1.bf16.msra.mxu0 %v325
    %451 = vmatprep.subr.bf16.mxu0 %v322
    %452 = vmatpush1.bf16.msra.mxu0 %v321
    %453 = vmatprep.subr.bf16.mxu0 %v318
    %454 = vmatpush1.bf16.msra.mxu0 %v317
    %455 = vmatprep.subr.bf16.mxu0 %v314
    %456 = vmatpush1.bf16.msra.mxu0 %v313
    %457 = vmatprep.subr.bf16.mxu0 %v374
    %458 = vmatpush2.bf16.msra.mxu0 %v373
    %459 = vmatprep.subr.bf16.mxu0 %v370
    %460 = vmatpush2.bf16.msra.mxu0 %v369
    %461 = vmatprep.subr.bf16.mxu0 %v366
    %462 = vmatpush2.bf16.msra.mxu0 %v365
    %463 = vmatprep.subr.bf16.mxu0 %v362
    %464 = vmatpush2.bf16.msra.mxu0 %v361
    %465 = vmatprep.subr.bf16.mxu0 %v358
    %466 = vmatpush2.bf16.msra.mxu0 %v357
    %467 = vmatprep.subr.bf16.mxu0 %v354
    %468 = vmatpush2.bf16.msra.mxu0 %v353
    %469 = vmatprep.subr.bf16.mxu0 %v350
    %470 = vmatpush2.bf16.msra.mxu0 %v349
    %471 = vmatprep.subr.bf16.mxu0 %v346
    %472 = vmatpush2.bf16.msra.mxu0 %v345
    %473 = vmatprep.mubr.bf16.mxu0 %v56
    %474 = vmatmul.mubr.bf16.gmra.mxu0 %v55
    %v475 = vpop.f32.mrf.mxu0
    %v476 = vadd.f32 0.0, %v475
    %v477 = vpop.f32.mrf.mxu0
    %v478 = vadd.f32 0.0, %v477
    %v479 = vpop.f32.mrf.mxu0
    %v480 = vpop.f32.mrf.mxu0
    %481 = vdwg.mxu0
    %482 = vmatprep.subr.bf16.mxu0 %v344
    %483 = vmatpush1.bf16.msra.mxu0 %v343
    %484 = vmatprep.subr.bf16.mxu0 %v340
    %485 = vmatpush1.bf16.msra.mxu0 %v339
    %486 = vmatprep.subr.bf16.mxu0 %v336
    %487 = vmatpush1.bf16.msra.mxu0 %v335
    %488 = vmatprep.subr.bf16.mxu0 %v332
    %489 = vmatpush1.bf16.msra.mxu0 %v331
    %490 = vmatprep.subr.bf16.mxu0 %v328
    %491 = vmatpush1.bf16.msra.mxu0 %v327
    %492 = vmatprep.subr.bf16.mxu0 %v324
    %493 = vmatpush1.bf16.msra.mxu0 %v323
    %494 = vmatprep.subr.bf16.mxu0 %v320
    %495 = vmatpush1.bf16.msra.mxu0 %v319
    %496 = vmatprep.subr.bf16.mxu0 %v316
    %497 = vmatpush1.bf16.msra.mxu0 %v315
    %498 = vmatprep.subr.bf16.mxu0 %v376
    %499 = vmatpush2.bf16.msra.mxu0 %v375
    %500 = vmatprep.subr.bf16.mxu0 %v372
    %501 = vmatpush2.bf16.msra.mxu0 %v371
    %502 = vmatprep.subr.bf16.mxu0 %v368
    %503 = vmatpush2.bf16.msra.mxu0 %v367
    %504 = vmatprep.subr.bf16.mxu0 %v364
    %505 = vmatpush2.bf16.msra.mxu0 %v363
    %506 = vmatprep.subr.bf16.mxu0 %v360
    %507 = vmatpush2.bf16.msra.mxu0 %v359
    %508 = vmatprep.subr.bf16.mxu0 %v356
    %509 = vmatpush2.bf16.msra.mxu0 %v355
    %510 = vmatprep.subr.bf16.mxu0 %v352
    %511 = vmatpush2.bf16.msra.mxu0 %v351
    %512 = vmatprep.subr.bf16.mxu0 %v348
    %513 = vmatpush2.bf16.msra.mxu0 %v347
    %514 = vmatprep.mubr.bf16.mxu0 %v56
    %515 = vmatmul.mubr.bf16.gmra.mxu0 %v55
    %v516 = vpop.f32.mrf.mxu0
    %v517 = vadd.f32 0.0, %v516
    %v518 = vpop.f32.mrf.mxu0
    %v519 = vadd.f32 0.0, %v518
    %v520 = vpop.f32.mrf.mxu0
    %v521 = vpop.f32.mrf.mxu0
    %522 = vdwg.mxu0
    %vm523 = vcmp.gt.f32.partialorder %v476, 0.0
    %vm524 = vcmp.gt.f32.partialorder %v478, 0.0
    %vm525 = vcmp.gt.f32.partialorder %v517, 0.0
    %vm526 = vcmp.gt.f32.partialorder %v519, 0.0
    %v527 = vmul.f32 %v476, 0.2
    %v528 = vmul.f32 %v478, 0.2
    %v529 = vmul.f32 %v517, 0.2
    %v530 = vmul.f32 %v519, 0.2
    %v531 = vsel %vm523, %v476, %v527
    %v532 = vsel %vm524, %v478, %v528
    %v533 = vsel %vm525, %v517, %v529
    %v534 = vsel %vm526, %v519, %v530
    %v535 = vpack.c.bf16 %v531, %v531
    %v536 = vpack.c.bf16 %v532, %v532
    %v537 = vpack.c.bf16 %v533, %v533
    %v538 = vpack.c.bf16 %v534, %v534
    %v539 = vld [vmem:[#allocation5] sm:$0xf]
    %v540 = vld [vmem:[#allocation5 + $0x4] sm:$0xf]
    %v541 = vld [vmem:[#allocation5 + $0x8] sm:$0xf]
    %v542 = vld [vmem:[#allocation5 + $0xc] sm:$0xf]
    %v543 = vld [vmem:[#allocation5 + $0x10] sm:$0xf]
    %v544 = vld [vmem:[#allocation5 + $0x14] sm:$0xf]
    %v545 = vld [vmem:[#allocation5 + $0x18] sm:$0xf]
    %v546 = vld [vmem:[#allocation5 + $0x1c] sm:$0xf]
    %v547 = vld [vmem:[#allocation5 + $0x20] sm:$0xf]
    %v548 = vld [vmem:[#allocation5 + $0x24] sm:$0xf]
    %v549 = vld [vmem:[#allocation5 + $0x28] sm:$0xf]
    %v550 = vld [vmem:[#allocation5 + $0x2c] sm:$0xf]
    %v551 = vld [vmem:[#allocation5 + $0x30] sm:$0xf]
    %v552 = vld [vmem:[#allocation5 + $0x34] sm:$0xf]
    %v553 = vld [vmem:[#allocation5 + $0x38] sm:$0xf]
    %v554 = vld [vmem:[#allocation5 + $0x3c] sm:$0xf]
    %v555 = vld [vmem:[#allocation5 + $0x40] sm:$0xf]
    %v556 = vld [vmem:[#allocation5 + $0x44] sm:$0xf]
    %v557 = vld [vmem:[#allocation5 + $0x48] sm:$0xf]
    %v558 = vld [vmem:[#allocation5 + $0x4c] sm:$0xf]
    %v559 = vld [vmem:[#allocation5 + $0x50] sm:$0xf]
    %v560 = vld [vmem:[#allocation5 + $0x54] sm:$0xf]
    %v561 = vld [vmem:[#allocation5 + $0x58] sm:$0xf]
    %v562 = vld [vmem:[#allocation5 + $0x5c] sm:$0xf]
    %v563 = vld [vmem:[#allocation5 + $0x60] sm:$0xf]
    %v564 = vld [vmem:[#allocation5 + $0x64] sm:$0xf]
    %v565 = vld [vmem:[#allocation5 + $0x68] sm:$0xf]
    %v566 = vld [vmem:[#allocation5 + $0x6c] sm:$0xf]
    %v567 = vld [vmem:[#allocation5 + $0x70] sm:$0xf]
    %v568 = vld [vmem:[#allocation5 + $0x74] sm:$0xf]
    %v569 = vld [vmem:[#allocation5 + $0x78] sm:$0xf]
    %v570 = vld [vmem:[#allocation5 + $0x7c] sm:$0xf]
    %v571 = vld [vmem:[#allocation5 + $0x80] sm:$0xf]
    %v572 = vld [vmem:[#allocation5 + $0x84] sm:$0xf]
    %v573 = vld [vmem:[#allocation5 + $0x88] sm:$0xf]
    %v574 = vld [vmem:[#allocation5 + $0x8c] sm:$0xf]
    %v575 = vld [vmem:[#allocation5 + $0x90] sm:$0xf]
    %v576 = vld [vmem:[#allocation5 + $0x94] sm:$0xf]
    %v577 = vld [vmem:[#allocation5 + $0x98] sm:$0xf]
    %v578 = vld [vmem:[#allocation5 + $0x9c] sm:$0xf]
    %v579 = vld [vmem:[#allocation5 + $0xa0] sm:$0xf]
    %v580 = vld [vmem:[#allocation5 + $0xa4] sm:$0xf]
    %v581 = vld [vmem:[#allocation5 + $0xa8] sm:$0xf]
    %v582 = vld [vmem:[#allocation5 + $0xac] sm:$0xf]
    %v583 = vld [vmem:[#allocation5 + $0xb0] sm:$0xf]
    %v584 = vld [vmem:[#allocation5 + $0xb4] sm:$0xf]
    %v585 = vld [vmem:[#allocation5 + $0xb8] sm:$0xf]
    %v586 = vld [vmem:[#allocation5 + $0xbc] sm:$0xf]
    %v587 = vld [vmem:[#allocation5 + $0xc0] sm:$0xf]
    %v588 = vld [vmem:[#allocation5 + $0xc4] sm:$0xf]
    %v589 = vld [vmem:[#allocation5 + $0xc8] sm:$0xf]
    %v590 = vld [vmem:[#allocation5 + $0xcc] sm:$0xf]
    %v591 = vld [vmem:[#allocation5 + $0xd0] sm:$0xf]
    %v592 = vld [vmem:[#allocation5 + $0xd4] sm:$0xf]
    %v593 = vld [vmem:[#allocation5 + $0xd8] sm:$0xf]
    %v594 = vld [vmem:[#allocation5 + $0xdc] sm:$0xf]
    %v595 = vld [vmem:[#allocation5 + $0xe0] sm:$0xf]
    %v596 = vld [vmem:[#allocation5 + $0xe4] sm:$0xf]
    %v597 = vld [vmem:[#allocation5 + $0xe8] sm:$0xf]
    %v598 = vld [vmem:[#allocation5 + $0xec] sm:$0xf]
    %v599 = vld [vmem:[#allocation5 + $0xf0] sm:$0xf]
    %v600 = vld [vmem:[#allocation5 + $0xf4] sm:$0xf]
    %v601 = vld [vmem:[#allocation5 + $0xf8] sm:$0xf]
    %v602 = vld [vmem:[#allocation5 + $0xfc] sm:$0xf]
    %v667 = vunpack.c.l.b16 %v539
    %v668 = vunpack.c.l.b16 %v540
    %v669 = vunpack.c.l.b16 %v541
    %v670 = vunpack.c.l.b16 %v542
    %v671 = vunpack.c.l.b16 %v543
    %v672 = vunpack.c.l.b16 %v544
    %v673 = vunpack.c.l.b16 %v545
    %v674 = vunpack.c.l.b16 %v546
    %v675 = vunpack.c.l.b16 %v547
    %v676 = vunpack.c.l.b16 %v548
    %v677 = vunpack.c.l.b16 %v549
    %v678 = vunpack.c.l.b16 %v550
    %v679 = vunpack.c.l.b16 %v551
    %v680 = vunpack.c.l.b16 %v552
    %v681 = vunpack.c.l.b16 %v553
    %v682 = vunpack.c.l.b16 %v554
    %v683 = vunpack.c.l.b16 %v555
    %v684 = vunpack.c.l.b16 %v556
    %v685 = vunpack.c.l.b16 %v557
    %v686 = vunpack.c.l.b16 %v558
    %v687 = vunpack.c.l.b16 %v559
    %v688 = vunpack.c.l.b16 %v560
    %v689 = vunpack.c.l.b16 %v561
    %v690 = vunpack.c.l.b16 %v562
    %v691 = vunpack.c.l.b16 %v563
    %v692 = vunpack.c.l.b16 %v564
    %v693 = vunpack.c.l.b16 %v565
    %v694 = vunpack.c.l.b16 %v566
    %v695 = vunpack.c.l.b16 %v567
    %v696 = vunpack.c.l.b16 %v568
    %v697 = vunpack.c.l.b16 %v569
    %v698 = vunpack.c.l.b16 %v570
    %v699 = vunpack.c.l.b16 %v571
    %v700 = vunpack.c.l.b16 %v572
    %v701 = vunpack.c.l.b16 %v573
    %v702 = vunpack.c.l.b16 %v574
    %v703 = vunpack.c.l.b16 %v575
    %v704 = vunpack.c.l.b16 %v576
    %v705 = vunpack.c.l.b16 %v577
    %v706 = vunpack.c.l.b16 %v578
    %v707 = vunpack.c.l.b16 %v579
    %v708 = vunpack.c.l.b16 %v580
    %v709 = vunpack.c.l.b16 %v581
    %v710 = vunpack.c.l.b16 %v582
    %v711 = vunpack.c.l.b16 %v583
    %v712 = vunpack.c.l.b16 %v584
    %v713 = vunpack.c.l.b16 %v585
    %v714 = vunpack.c.l.b16 %v586
    %v715 = vunpack.c.l.b16 %v587
    %v716 = vunpack.c.l.b16 %v588
    %v717 = vunpack.c.l.b16 %v589
    %v718 = vunpack.c.l.b16 %v590
    %v719 = vunpack.c.l.b16 %v591
    %v720 = vunpack.c.l.b16 %v592
    %v721 = vunpack.c.l.b16 %v593
    %v722 = vunpack.c.l.b16 %v594
    %v723 = vunpack.c.l.b16 %v595
    %v724 = vunpack.c.l.b16 %v596
    %v725 = vunpack.c.l.b16 %v597
    %v726 = vunpack.c.l.b16 %v598
    %v727 = vunpack.c.l.b16 %v599
    %v728 = vunpack.c.l.b16 %v600
    %v729 = vunpack.c.l.b16 %v601
    %v730 = vunpack.c.l.b16 %v602
    %v731 = vpack.c.b16 %v668, %v667
    %v732 = vpack.c.b16 %v670, %v669
    %v733 = vpack.c.b16 %v672, %v671
    %v734 = vpack.c.b16 %v674, %v673
    %v735 = vpack.c.b16 %v676, %v675
    %v736 = vpack.c.b16 %v678, %v677
    %v737 = vpack.c.b16 %v680, %v679
    %v738 = vpack.c.b16 %v682, %v681
    %v739 = vpack.c.b16 %v684, %v683
    %v740 = vpack.c.b16 %v686, %v685
    %v741 = vpack.c.b16 %v688, %v687
    %v742 = vpack.c.b16 %v690, %v689
    %v743 = vpack.c.b16 %v692, %v691
    %v744 = vpack.c.b16 %v694, %v693
    %v745 = vpack.c.b16 %v696, %v695
    %v746 = vpack.c.b16 %v698, %v697
    %v747 = vpack.c.b16 %v700, %v699
    %v748 = vpack.c.b16 %v702, %v701
    %v749 = vpack.c.b16 %v704, %v703
    %v750 = vpack.c.b16 %v706, %v705
    %v751 = vpack.c.b16 %v708, %v707
    %v752 = vpack.c.b16 %v710, %v709
    %v753 = vpack.c.b16 %v712, %v711
    %v754 = vpack.c.b16 %v714, %v713
    %v755 = vpack.c.b16 %v716, %v715
    %v756 = vpack.c.b16 %v718, %v717
    %v757 = vpack.c.b16 %v720, %v719
    %v758 = vpack.c.b16 %v722, %v721
    %v759 = vpack.c.b16 %v724, %v723
    %v760 = vpack.c.b16 %v726, %v725
    %v761 = vpack.c.b16 %v728, %v727
    %v762 = vpack.c.b16 %v730, %v729
    %795 = vmatprep.subr.bf16.mxu0 0
    %796 = vmatpush1.bf16.msra.mxu0 %v738
    %797 = vmatprep.subr.bf16.mxu0 0
    %798 = vmatpush1.bf16.msra.mxu0 %v737
    %799 = vmatprep.subr.bf16.mxu0 0
    %800 = vmatpush1.bf16.msra.mxu0 %v736
    %801 = vmatprep.subr.bf16.mxu0 0
    %802 = vmatpush1.bf16.msra.mxu0 %v735
    %803 = vmatprep.subr.bf16.mxu0 0
    %804 = vmatpush1.bf16.msra.mxu0 %v734
    %805 = vmatprep.subr.bf16.mxu0 0
    %806 = vmatpush1.bf16.msra.mxu0 %v733
    %807 = vmatprep.subr.bf16.mxu0 0
    %808 = vmatpush1.bf16.msra.mxu0 %v732
    %809 = vmatprep.subr.bf16.mxu0 0
    %810 = vmatpush1.bf16.msra.mxu0 %v731
    %811 = vmatprep.subr.bf16.mxu0 0
    %812 = vmatpush2.bf16.msra.mxu0 %v746
    %813 = vmatprep.subr.bf16.mxu0 0
    %814 = vmatpush2.bf16.msra.mxu0 %v745
    %815 = vmatprep.subr.bf16.mxu0 0
    %816 = vmatpush2.bf16.msra.mxu0 %v744
    %817 = vmatprep.subr.bf16.mxu0 0
    %818 = vmatpush2.bf16.msra.mxu0 %v743
    %819 = vmatprep.subr.bf16.mxu0 0
    %820 = vmatpush2.bf16.msra.mxu0 %v742
    %821 = vmatprep.subr.bf16.mxu0 0
    %822 = vmatpush2.bf16.msra.mxu0 %v741
    %823 = vmatprep.subr.bf16.mxu0 0
    %824 = vmatpush2.bf16.msra.mxu0 %v740
    %825 = vmatprep.subr.bf16.mxu0 0
    %826 = vmatpush2.bf16.msra.mxu0 %v739
    %827 = vmatprep.mubr.bf16.mxu0 %v536
    %828 = vmatmul.mubr.bf16.gmra.mxu0 %v535
    %v829 = vpop.f32.mrf.mxu0
    %v830 = vadd.f32 0.0, %v829
    %v831 = vpop.f32.mrf.mxu0
    %v832 = vpop.f32.mrf.mxu0
    %v833 = vpop.f32.mrf.mxu0
    %834 = vdwg.mxu0
    %835 = vmatprep.subr.bf16.mxu0 0
    %836 = vmatpush1.bf16.msra.mxu0 %v754
    %837 = vmatprep.subr.bf16.mxu0 0
    %838 = vmatpush1.bf16.msra.mxu0 %v753
    %839 = vmatprep.subr.bf16.mxu0 0
    %840 = vmatpush1.bf16.msra.mxu0 %v752
    %841 = vmatprep.subr.bf16.mxu0 0
    %842 = vmatpush1.bf16.msra.mxu0 %v751
    %843 = vmatprep.subr.bf16.mxu0 0
    %844 = vmatpush1.bf16.msra.mxu0 %v750
    %845 = vmatprep.subr.bf16.mxu0 0
    %846 = vmatpush1.bf16.msra.mxu0 %v749
    %847 = vmatprep.subr.bf16.mxu0 0
    %848 = vmatpush1.bf16.msra.mxu0 %v748
    %849 = vmatprep.subr.bf16.mxu0 0
    %850 = vmatpush1.bf16.msra.mxu0 %v747
    %851 = vmatprep.subr.bf16.mxu0 0
    %852 = vmatpush2.bf16.msra.mxu0 %v762
    %853 = vmatprep.subr.bf16.mxu0 0
    %854 = vmatpush2.bf16.msra.mxu0 %v761
    %855 = vmatprep.subr.bf16.mxu0 0
    %856 = vmatpush2.bf16.msra.mxu0 %v760
    %857 = vmatprep.subr.bf16.mxu0 0
    %858 = vmatpush2.bf16.msra.mxu0 %v759
    %859 = vmatprep.subr.bf16.mxu0 0
    %860 = vmatpush2.bf16.msra.mxu0 %v758
    %861 = vmatprep.subr.bf16.mxu0 0
    %862 = vmatpush2.bf16.msra.mxu0 %v757
    %863 = vmatprep.subr.bf16.mxu0 0
    %864 = vmatpush2.bf16.msra.mxu0 %v756
    %865 = vmatprep.subr.bf16.mxu0 0
    %866 = vmatpush2.bf16.msra.mxu0 %v755
    %867 = vmatprep.mubr.bf16.mxu0 %v538
    %868 = vmatmul.mubr.bf16.gmra.mxu0 %v537
    %v869 = vpop.f32.mrf.mxu0
    %v870 = vadd.f32 %v830, %v869
    %v871 = vpop.f32.mrf.mxu0
    %v872 = vpop.f32.mrf.mxu0
    %v873 = vpop.f32.mrf.mxu0
    %874 = vdwg.mxu0
    %vm875 = vcmp.gt.f32.partialorder %v870, 0.0
    %v876 = vmul.f32 %v870, 0.2
    %v877 = vsel %vm875, %v870, %v876
    %v878 = vpack.c.bf16 %v877, %v877
    %v879 = vld [vmem:[%s3] sm:$0xf]
    %v880 = vld [vmem:[%s3 + $0x4] sm:$0xf]
    %v881 = vld [vmem:[%s3 + $0x8] sm:$0xf]
    %v882 = vld [vmem:[%s3 + $0xc] sm:$0xf]
    %v883 = vld [vmem:[%s3 + $0x10] sm:$0xf]
    %v884 = vld [vmem:[%s3 + $0x14] sm:$0xf]
    %v885 = vld [vmem:[%s3 + $0x18] sm:$0xf]
    %v886 = vld [vmem:[%s3 + $0x1c] sm:$0xf]
    %v887 = vld [vmem:[%s3 + $0x20] sm:$0xf]
    %v888 = vld [vmem:[%s3 + $0x24] sm:$0xf]
    %v889 = vld [vmem:[%s3 + $0x28] sm:$0xf]
    %v890 = vld [vmem:[%s3 + $0x2c] sm:$0xf]
    %v891 = vld [vmem:[%s3 + $0x30] sm:$0xf]
    %v892 = vld [vmem:[%s3 + $0x34] sm:$0xf]
    %v893 = vld [vmem:[%s3 + $0x38] sm:$0xf]
    %v894 = vld [vmem:[%s3 + $0x3c] sm:$0xf]
    %v911 = vunpack.c.l.b16 %v879
    %v912 = vunpack.c.l.b16 %v880
    %v913 = vunpack.c.l.b16 %v881
    %v914 = vunpack.c.l.b16 %v882
    %v915 = vunpack.c.l.b16 %v883
    %v916 = vunpack.c.l.b16 %v884
    %v917 = vunpack.c.l.b16 %v885
    %v918 = vunpack.c.l.b16 %v886
    %v919 = vunpack.c.l.b16 %v887
    %v920 = vunpack.c.l.b16 %v888
    %v921 = vunpack.c.l.b16 %v889
    %v922 = vunpack.c.l.b16 %v890
    %v923 = vunpack.c.l.b16 %v891
    %v924 = vunpack.c.l.b16 %v892
    %v925 = vunpack.c.l.b16 %v893
    %v926 = vunpack.c.l.b16 %v894
    %v927 = vpack.c.b16 %v912, %v911
    %v928 = vpack.c.b16 %v914, %v913
    %v929 = vpack.c.b16 %v916, %v915
    %v930 = vpack.c.b16 %v918, %v917
    %v931 = vpack.c.b16 %v920, %v919
    %v932 = vpack.c.b16 %v922, %v921
    %v933 = vpack.c.b16 %v924, %v923
    %v934 = vpack.c.b16 %v926, %v925
    %943 = vmatprep.subr.bf16.mxu0 0
    %944 = vmatpush1.bf16.msra.mxu0 %v934
    %945 = vmatprep.subr.bf16.mxu0 0
    %946 = vmatpush1.bf16.msra.mxu0 %v933
    %947 = vmatprep.subr.bf16.mxu0 0
    %948 = vmatpush1.bf16.msra.mxu0 %v932
    %949 = vmatprep.subr.bf16.mxu0 0
    %950 = vmatpush1.bf16.msra.mxu0 %v931
    %951 = vmatprep.subr.bf16.mxu0 0
    %952 = vmatpush1.bf16.msra.mxu0 %v930
    %953 = vmatprep.subr.bf16.mxu0 0
    %954 = vmatpush1.bf16.msra.mxu0 %v929
    %955 = vmatprep.subr.bf16.mxu0 0
    %956 = vmatpush1.bf16.msra.mxu0 %v928
    %957 = vmatprep.subr.bf16.mxu0 0
    %958 = vmatpush1.bf16.msra.mxu0 %v927
    %959 = vmatprep.subr.bf16.mxu0 0
    %960 = vmatpush2.bf16.msra.mxu0 0
    %961 = vmatprep.subr.bf16.mxu0 0
    %962 = vmatpush2.bf16.msra.mxu0 0
    %963 = vmatprep.subr.bf16.mxu0 0
    %964 = vmatpush2.bf16.msra.mxu0 0
    %965 = vmatprep.subr.bf16.mxu0 0
    %966 = vmatpush2.bf16.msra.mxu0 0
    %967 = vmatprep.subr.bf16.mxu0 0
    %968 = vmatpush2.bf16.msra.mxu0 0
    %969 = vmatprep.subr.bf16.mxu0 0
    %970 = vmatpush2.bf16.msra.mxu0 0
    %971 = vmatprep.subr.bf16.mxu0 0
    %972 = vmatpush2.bf16.msra.mxu0 0
    %973 = vmatprep.subr.bf16.mxu0 0
    %974 = vmatpush2.bf16.msra.mxu0 0
    %975 = vmatprep.mubr.bf16.mxu0 0
    %976 = vmatmul.mubr.bf16.gmra.mxu0 %v878
    %v977 = vpop.f32.mrf.mxu0
    %v978 = vadd.f32 0.0, %v977
    %v979 = vpop.f32.mrf.mxu0
    %v980 = vpop.f32.mrf.mxu0
    %v981 = vpop.f32.mrf.mxu0
    %982 = vdwg.mxu0
    %vm983 = vcmp.gt.f32.partialorder %v978, 0.0
    %v984 = vmul.f32 %v978, 0.2
    %v985 = vsel %vm983, %v978, %v984
    %v986 = vpack.c.bf16 %v985, %v985
    %v987 = vld [vmem:[%s4] sm:$0xf]
    %v988 = vld [vmem:[%s4 + $0x4] sm:$0xf]
    %v989 = vld [vmem:[%s4 + $0x8] sm:$0xf]
    %v990 = vld [vmem:[%s4 + $0xc] sm:$0xf]
    %v991 = vld [vmem:[%s4 + $0x10] sm:$0xf]
    %v992 = vld [vmem:[%s4 + $0x14] sm:$0xf]
    %v993 = vld [vmem:[%s4 + $0x18] sm:$0xf]
    %v994 = vld [vmem:[%s4 + $0x1c] sm:$0xf]
    %v995 = vld [vmem:[%s4 + $0x20] sm:$0xf]
    %v996 = vld [vmem:[%s4 + $0x24] sm:$0xf]
    %v997 = vld [vmem:[%s4 + $0x28] sm:$0xf]
    %v998 = vld [vmem:[%s4 + $0x2c] sm:$0xf]
    %v999 = vld [vmem:[%s4 + $0x30] sm:$0xf]
    %v1000 = vld [vmem:[%s4 + $0x34] sm:$0xf]
    %v1001 = vld [vmem:[%s4 + $0x38] sm:$0xf]
    %v1002 = vld [vmem:[%s4 + $0x3c] sm:$0xf]
    %v1019 = vunpack.c.l.b16 %v987
    %v1020 = vunpack.c.l.b16 %v988
    %v1021 = vunpack.c.l.b16 %v989
    %v1022 = vunpack.c.l.b16 %v990
    %v1023 = vunpack.c.l.b16 %v991
    %v1024 = vunpack.c.l.b16 %v992
    %v1025 = vunpack.c.l.b16 %v993
    %v1026 = vunpack.c.l.b16 %v994
    %v1027 = vunpack.c.l.b16 %v995
    %v1028 = vunpack.c.l.b16 %v996
    %v1029 = vunpack.c.l.b16 %v997
    %v1030 = vunpack.c.l.b16 %v998
    %v1031 = vunpack.c.l.b16 %v999
    %v1032 = vunpack.c.l.b16 %v1000
    %v1033 = vunpack.c.l.b16 %v1001
    %v1034 = vunpack.c.l.b16 %v1002
    %v1035 = vpack.c.b16 %v1020, %v1019
    %v1036 = vpack.c.b16 %v1022, %v1021
    %v1037 = vpack.c.b16 %v1024, %v1023
    %v1038 = vpack.c.b16 %v1026, %v1025
    %v1039 = vpack.c.b16 %v1028, %v1027
    %v1040 = vpack.c.b16 %v1030, %v1029
    %v1041 = vpack.c.b16 %v1032, %v1031
    %v1042 = vpack.c.b16 %v1034, %v1033
    %1051 = vmatprep.subr.bf16.mxu0 0
    %1052 = vmatpush1.bf16.msra.mxu0 %v1042
    %1053 = vmatprep.subr.bf16.mxu0 0
    %1054 = vmatpush1.bf16.msra.mxu0 %v1041
    %1055 = vmatprep.subr.bf16.mxu0 0
    %1056 = vmatpush1.bf16.msra.mxu0 %v1040
    %1057 = vmatprep.subr.bf16.mxu0 0
    %1058 = vmatpush1.bf16.msra.mxu0 %v1039
    %1059 = vmatprep.subr.bf16.mxu0 0
    %1060 = vmatpush1.bf16.msra.mxu0 %v1038
    %1061 = vmatprep.subr.bf16.mxu0 0
    %1062 = vmatpush1.bf16.msra.mxu0 %v1037
    %1063 = vmatprep.subr.bf16.mxu0 0
    %1064 = vmatpush1.bf16.msra.mxu0 %v1036
    %1065 = vmatprep.subr.bf16.mxu0 0
    %1066 = vmatpush1.bf16.msra.mxu0 %v1035
    %1067 = vmatprep.subr.bf16.mxu0 0
    %1068 = vmatpush2.bf16.msra.mxu0 0
    %1069 = vmatprep.subr.bf16.mxu0 0
    %1070 = vmatpush2.bf16.msra.mxu0 0
    %1071 = vmatprep.subr.bf16.mxu0 0
    %1072 = vmatpush2.bf16.msra.mxu0 0
    %1073 = vmatprep.subr.bf16.mxu0 0
    %1074 = vmatpush2.bf16.msra.mxu0 0
    %1075 = vmatprep.subr.bf16.mxu0 0
    %1076 = vmatpush2.bf16.msra.mxu0 0
    %1077 = vmatprep.subr.bf16.mxu0 0
    %1078 = vmatpush2.bf16.msra.mxu0 0
    %1079 = vmatprep.subr.bf16.mxu0 0
    %1080 = vmatpush2.bf16.msra.mxu0 0
    %1081 = vmatprep.subr.bf16.mxu0 0
    %1082 = vmatpush2.bf16.msra.mxu0 0
    %1083 = vmatprep.mubr.bf16.mxu0 0
    %1084 = vmatmul.mubr.bf16.gmra.mxu0 %v986
    %v1085 = vpop.f32.mrf.mxu0
    %v1086 = vadd.f32 0.0, %v1085
    %v1087 = vpop.f32.mrf.mxu0
    %v1088 = vpop.f32.mrf.mxu0
    %v1089 = vpop.f32.mrf.mxu0
    %1090 = vdwg.mxu0
    %vm1091 = vcmp.gt.f32.partialorder %v1086, 0.0
    %v1092 = vmul.f32 %v1086, 0.2
    %v1093 = vsel %vm1091, %v1086, %v1092
    %v1094 = vld [vmem:[%s5] sm:$0x1]
    %v1096 = vlaneseq
    %v1097 = vshrl.u32 %v1096, 7
    %v1098 = vsub.s32 0, %v1097
    %v1099 = vrot.slane %v1094, %v1098
    %v1101 = vmul.f32 %v1093, %v1099
    %1102 = vadd.xlane.f32.xlu0 %v1101
    %v1103 = vpop.xlane.xlu0 %1102
    %v1105 = vlaneseq
    %v1106 = vand.u32 %v1105, 127
    %v1107 = vlaneseq
    %v1108 = vshrl.u32 %v1107, 7
    %v1109 = vsub.s32 %v1106, %v1108
    %v1110 = vrot.slane %v1103, %v1109
    %vm1112 = vcmask 57344
    %1113 = vst.msk [vmem:[#allocation7] sm:$0x1] %vm1112, %v1110
    // Predicated region
    $region34: #{discriminator_forward.1} parent=1 // pred_check
      _
    $region35: #{discriminator_forward.1} parent=1 // pred_check_branch
      %1115 = sbr.rel (0) target = $region37
    $region36: #{discriminator_forward.1} parent=1 // pred_region
      %s1117 = ssub.s32 16, 16
      %1118 = vsyncadd [#allocation4], %s1117
      %s1120 = sshll.u32 [#allocation7], 4
      %s1121 = int_to_ptr.vmem [resolvable:$true] %s1120
      %1123 = dma.vmem_to_hbm [thread:$0]  %s1121, 16, %s6, [#allocation4]
    $region37: #{discriminator_forward.1} parent=1 // pred_fallthru
      _
    // Predicated region
    $region38: #{discriminator_forward.1} parent=1 // pred_check
      _
    $region39: #{discriminator_forward.1} parent=1 // pred_check_branch
      %1125 = sbr.rel (0) target = $region41
    $region40: #{discriminator_forward.1} parent=1 // pred_region
      %1126 = dma.done [#allocation4], 16
    $region41: #{discriminator_forward.1} parent=1 // pred_fallthru
      _
    %1127 = vsyncpa [#allocation3], 1
    %1128 = vsyncpa [#allocation6], 1
    %1129 = vsyncpa [#allocation4], 1

</llo_original>
